<compile_context>
chip_gen: v5e
topology: v5e:2x2
jax: 0.10.0
libtpu: 0.0.40
codegen_flags: <defaults>
</compile_context>

<pallas_src>
import functools

import jax
import jax.numpy as jnp
from jax.experimental import pallas as pl
from jax.experimental.pallas import tpu as pltpu


# ---------------------------------------------------------------------------
# Kernel 1: projection prologue (row-tiled over N, weights resident).
# ---------------------------------------------------------------------------
def project_kernel(h_ref, w_ref, a_ref, z_ref, e_dst_ref, e_srcT_ref,
                   *, heads, out_dim, threshold):
    # SparseLinear(fc): magnitude-threshold mask (tiny; recomputed per row tile).
    w = w_ref[...]
    w = jnp.where(jnp.abs(w) > threshold, w, 0.0)
    z = jnp.dot(h_ref[...], w, preferred_element_type=jnp.float32)      # [tm, H*D]

    # SparseLinear(attn_fc): masked block-diagonal weights, src/dst halves fused into
    # one [H*D, 2H] RHS -> one MXU pass instead of 2*H mat-vecs.
    a = a_ref[...]
    a = jnp.where(jnp.abs(a) > threshold, a, 0.0)
    scores = jnp.dot(z, a, preferred_element_type=jnp.float32)          # [tm, 2H]

    # z_aug layout: per head [D value columns | ones column]. The ones column folds
    # the softmax denominator row-sum into the p @ z_aug matmul in kernel 2.
    tm = z.shape[0]
    ones = jnp.ones((tm, 1), jnp.float32)
    pieces = []
    for k in range(heads):
        pieces.append(z[:, k * out_dim:(k + 1) * out_dim])
        pieces.append(ones)
    z_ref[...] = jnp.concatenate(pieces, axis=-1)                        # [tm, H*(D+1)]

    e_dst_ref[...] = scores[:, heads:]                                   # [tm, H]
    e_srcT_ref[...] = scores[:, :heads].T                                # [H, tm] (transpose once)


# ---------------------------------------------------------------------------
# Kernel 2: tiled masked-softmax aggregation (online softmax over src tiles).
# ---------------------------------------------------------------------------
def attn_kernel(adj_ref, e_dst_ref, e_srcT_ref, z_ref, out_ref,
                m_sc, acc_sc, *, heads, out_dim, src_tile, apply_elu, neg_slope):
    j = pl.program_id(1)
    dp = out_dim + 1

    @pl.when(j == 0)
    def _init():
        m_sc[...] = jnp.full(m_sc.shape, -1e30, m_sc.dtype)
        acc_sc[...] = jnp.zeros(acc_sc.shape, acc_sc.dtype)

    # Mask -> additive bias, hoisted out of the head loop (1 select per tile, not H).
    bias = jnp.where(adj_ref[...] > 0, 0.0, -1e30)                       # [TD, TS] f32
    e_dst = e_dst_ref[...]                                               # [TD, H]
    e_srcT = e_srcT_ref[...]                                             # [H, TS]

    # z_aug is VMEM-resident (full-N block, constant index_map); slice the src window.
    src0 = pl.multiple_of(j * src_tile, src_tile)
    z = z_ref[pl.ds(src0, src_tile), :]                                  # [TS, H*(D+1)]

    m_old_all = m_sc[...]                                                # [TD, H]
    acc_old = acc_sc[...]                                                # [TD, H*(D+1)]

    new_m, new_acc = [], []
    for h in range(heads):
        ed = e_dst[:, h:h + 1]                                           # [TD, 1]
        es = e_srcT[h:h + 1, :]                                          # [1, TS]
        s = ed + es                                                      # [TD, TS]
        e = jnp.maximum(s, neg_slope * s) + bias                         # leaky_relu + mask bias

        m_old = m_old_all[:, h:h + 1]                                    # [TD, 1]
        m_new = jnp.maximum(m_old, jnp.max(e, axis=1, keepdims=True))
        scale = jnp.exp(m_old - m_new)
        # No second mask select: masked entries are ~-1e30 so exp underflows to exactly
        # 0 once a real edge has been seen; pre-first-edge garbage is washed out by
        # scale == 0 at the first real edge (>=1 edge/row guaranteed by self-loops).
        p = jnp.exp(e - m_new)                                           # [TD, TS]
        contrib = jnp.dot(p, z[:, h * dp:(h + 1) * dp],
                          preferred_element_type=jnp.float32)            # [TD, D+1] = [acc|denom]
        new_acc.append(acc_old[:, h * dp:(h + 1) * dp] * scale + contrib)
        new_m.append(m_new)

    # Single lane-dense scratch writeback per tile (no per-head ref sub-stores).
    m_sc[...] = jnp.concatenate(new_m, axis=-1)
    acc_sc[...] = jnp.concatenate(new_acc, axis=-1)

    @pl.when(j == pl.num_programs(1) - 1)
    def _finalize():
        acc = acc_sc[...]
        outs = []
        for h in range(heads):
            a = acc[:, h * dp:h * dp + out_dim]                          # [TD, D]
            l = acc[:, h * dp + out_dim:(h + 1) * dp]                    # [TD, 1] denom
            outs.append(a * pl.reciprocal(l, approx=True))               # deferred normalization
        hout = jnp.concatenate(outs, axis=-1)                            # [TD, H*D] lane-dense
        if apply_elu:                                                    # heads != 1 -> F.elu
            hout = jnp.where(hout > 0, hout, jnp.exp(hout) - 1.0)
        # TODO(synk): F.dropout(alpha) / F.dropout(h) skipped (module in eval mode).
        out_ref[...] = hout.astype(out_ref.dtype)


# ---------------------------------------------------------------------------
# Wrapper: fused weight layouts + the two pallas_calls.
# ---------------------------------------------------------------------------
def gat_multihead_forward(h, W, a_src, a_dst, adj, threshold, *,
                          dst_tile=512, src_tile=1024, row_tile=512):
    """
    h     : [N, in_dim]
    W     : [H, in_dim, out_dim]   per-head fc weights (transposed vs torch Linear)
    a_src : [H, out_dim]           attn weight on the SOURCE half of cat([z_src, z_dst])
    a_dst : [H, out_dim]           attn weight on the DEST half
    adj   : [N, N]                 adj[dst, src] > 0 iff edge src -> dst (int8 preferred)
    returns [N, H*out_dim], out[:, k*D:(k+1)*D] = head k output.
    """
    H, in_dim, D = W.shape
    N = h.shape[0]
    HD = H * D
    Dp = D + 1

    # fc weights stacked head-major along the lane axis: [in_dim, H*D].
    W_all = jnp.transpose(W, (1, 0, 2)).reshape(in_dim, HD)
    # Block-diagonal attention RHS [H*D, 2H]: col k holds a_src_k on rows k*D:(k+1)*D,
    # col H+k holds a_dst_k. Zero padding is invariant under the threshold mask.
    eye = jnp.eye(H, dtype=W.dtype)
    a_src_mat = (a_src[:, :, None] * eye[:, None, :]).reshape(HD, H)
    a_dst_mat = (a_dst[:, :, None] * eye[:, None, :]).reshape(HD, H)
    a_mat = jnp.concatenate([a_src_mat, a_dst_mat], axis=1)              # [H*D, 2H]

    # ---- Kernel 1: row-tiled projection prologue (weights resident). ----
    tm = N if N <= row_tile else row_tile
    assert N % tm == 0, "N must be divisible by row_tile"
    assert tm == N or tm % 128 == 0, "row tile must be a multiple of 128 (or == N)"

    z_aug, e_dst, e_srcT = pl.pallas_call(
        functools.partial(project_kernel, heads=H, out_dim=D, threshold=float(threshold)),
        out_shape=(
            jax.ShapeDtypeStruct((N, H * Dp), jnp.float32),   # z_aug = per head [z | 1]
            jax.ShapeDtypeStruct((N, H), jnp.float32),        # e_dst
            jax.ShapeDtypeStruct((H, N), jnp.float32),        # e_src, pre-transposed
        ),
        grid_spec=pltpu.PrefetchScalarGridSpec(
            num_scalar_prefetch=0,
            grid=(N // tm,),
            in_specs=[
                pl.BlockSpec((tm, in_dim), lambda i: (i, 0)),    # h rows
                pl.BlockSpec((in_dim, HD), lambda i: (0, 0)),    # W_all (resident)
                pl.BlockSpec((HD, 2 * H), lambda i: (0, 0)),     # a_mat (resident)
            ],
            out_specs=(
                pl.BlockSpec((tm, H * Dp), lambda i: (i, 0)),
                pl.BlockSpec((tm, H), lambda i: (i, 0)),
                pl.BlockSpec((H, tm), lambda i: (0, i)),
            ),
        ),
        compiler_params=pltpu.CompilerParams(
            dimension_semantics=("arbitrary",),
            vmem_limit_bytes=32 * 1024 * 1024),
    )(h, W_all, a_mat)

    # ---- Kernel 2: tiled aggregation over the [N, N] adjacency. ----
    TD = N if N <= dst_tile else dst_tile
    TS = N if N <= src_tile else src_tile
    assert N % TD == 0 and N % TS == 0, "N must be divisible by the chosen tile sizes"
    assert TD == N or TD % 8 == 0
    assert TS == N or TS % 128 == 0
    # NOTE (v7x): keep N // TD >= 2 so the "parallel" dst axis splits across both TCs.

    # int8 adjacency: 4x less N^2 HBM traffic; only cast if the caller didn't already.
    # (Negative adjacency weights count as non-edges, matching the reference's `adj > 0`.)
    adj_i8 = adj if adj.dtype == jnp.int8 else (adj > 0).astype(jnp.int8)

    grid = (N // TD, N // TS)
    out = pl.pallas_call(
        functools.partial(attn_kernel, heads=H, out_dim=D, src_tile=TS,
                          apply_elu=(H != 1), neg_slope=0.01),
        out_shape=jax.ShapeDtypeStruct((N, HD), jnp.float32),
        grid_spec=pltpu.PrefetchScalarGridSpec(
            num_scalar_prefetch=0,
            grid=grid,
            in_specs=[
                pl.BlockSpec((TD, TS), lambda i, j: (i, j)),      # adj tile (int8)
                pl.BlockSpec((TD, H), lambda i, j: (i, 0)),       # e_dst (dst rows)
                pl.BlockSpec((H, TS), lambda i, j: (0, j)),       # e_srcT (src cols, tiny)
                pl.BlockSpec((N, H * Dp), lambda i, j: (0, 0)),   # z_aug: VMEM-resident
            ],
            out_specs=pl.BlockSpec((TD, HD), lambda i, j: (i, 0)),
            scratch_shapes=[
                pltpu.VMEM((TD, H), jnp.float32),        # running max per head
                pltpu.VMEM((TD, H * Dp), jnp.float32),   # running [acc | denom] per head
            ],
        ),
        compiler_params=pltpu.CompilerParams(
            dimension_semantics=("parallel", "arbitrary"),
            vmem_limit_bytes=32 * 1024 * 1024),          # raises v5e's 16 MiB default; <= v7x 64 MiB
    )(adj_i8, e_dst, e_srcT, z_aug)
    return out


# ---------------------------------------------------------------------------
# Pure-JAX reference (per-head, matches the PyTorch module in eval mode).
# ---------------------------------------------------------------------------
def gat_reference(h, W, a_src, a_dst, adj, threshold):
    H = W.shape[0]
    outs = []
    for k in range(H):
        Wm = jnp.where(jnp.abs(W[k]) > threshold, W[k], 0.0)
        a_s = jnp.where(jnp.abs(a_src[k]) > threshold, a_src[k], 0.0)[:, None]
        a_d = jnp.where(jnp.abs(a_dst[k]) > threshold, a_dst[k], 0.0)[:, None]
        z = h @ Wm
        e = (z @ a_d) + (z @ a_s).T
        e = jnp.where(e > 0, e, 0.01 * e)
        mask = adj > 0
        em = jnp.where(mask, e, -1e30)
        p = jnp.where(mask, jnp.exp(em - em.max(axis=1, keepdims=True)), 0.0)
        alpha = p / p.sum(axis=1, keepdims=True)
        o = alpha @ z
        if H != 1:
            o = jnp.where(o > 0, o, jnp.exp(o) - 1.0)
        outs.append(o)
    return jnp.concatenate(outs, axis=-1)


if __name__ == "__main__":
    def run_case(seed, N, in_dim, out_dim, heads, dst_tile, src_tile):
        key = jax.random.PRNGKey(seed)
        k_h, k_w, k_a, k_adj = jax.random.split(key, 4)
        threshold = 0.05
        h = jax.random.normal(k_h, (N, in_dim), dtype=jnp.float32)
        W = jax.random.normal(k_w, (heads, in_dim, out_dim), dtype=jnp.float32) * 0.2
        a_full = jax.random.normal(k_a, (heads, 2 * out_dim), dtype=jnp.float32) * 0.2
        a_src, a_dst = a_full[:, :out_dim], a_full[:, out_dim:]
        # Build adjacency directly in int8 (no per-call N^2 cast) with self-loops.
        adj = ((jax.random.uniform(k_adj, (N, N)) < 0.3)
               | jnp.eye(N, dtype=bool)).astype(jnp.int8)

        out = gat_multihead_forward(h, W, a_src, a_dst, adj, threshold,
                                    dst_tile=dst_tile, src_tile=src_tile)
        out = jax.block_until_ready(out)
        ref = gat_reference(h, W, a_src, a_dst, adj, threshold)
        err = jnp.max(jnp.abs(out - ref))
        assert jnp.allclose(out, ref, atol=2e-3, rtol=2e-3), f"mismatch, max abs err = {err}"

    # Small case (single block per array, grid = (1, 1)).
    run_case(seed=0, N=16, in_dim=32, out_dim=16, heads=4, dst_tile=512, src_tile=1024)
    # Tiled grid (2, 2): exercises online softmax across src tiles + resident-z slicing.
    run_case(seed=0, N=256, in_dim=32, out_dim=16, heads=4, dst_tile=128, src_tile=128)
    # Single-head case (no ELU path).
    run_case(seed=1, N=16, in_dim=32, out_dim=16, heads=1, dst_tile=512, src_tile=1024)

    print("KERNEL_OK")
</pallas_src>

<mosaic_0001>
module attributes {stable_mosaic.version = 11 : i64} {
  func.func @project_kernel(%arg0: i32, %arg1: memref<16x32xf32, #tpu.memory_space<vmem>>, %arg2: memref<32x64xf32, #tpu.memory_space<vmem>>, %arg3: memref<64x8xf32, #tpu.memory_space<vmem>>, %arg4: memref<16x68xf32, #tpu.memory_space<vmem>>, %arg5: memref<16x4xf32, #tpu.memory_space<vmem>>, %arg6: memref<4x16xf32, #tpu.memory_space<vmem>>) attributes {dimension_semantics = [#tpu.dimension_semantics<arbitrary>], iteration_bounds = array<i64: 1>, scalar_prefetch = 0 : i64, scratch_operands = 0 : i64, tpu.core_type = #tpu.core_type<tc>, window_params = [{transform_indices = @transform_0, window_bounds = array<i64: 16, 32>}, {pipeline_mode = #tpu.pipeline_mode<synchronous>, transform_indices = @transform_1, window_bounds = array<i64: 32, 64>}, {pipeline_mode = #tpu.pipeline_mode<synchronous>, transform_indices = @transform_2, window_bounds = array<i64: 64, 8>}, {transform_indices = @transform_3, window_bounds = array<i64: 16, 68>}, {transform_indices = @transform_4, window_bounds = array<i64: 16, 4>}, {transform_indices = @transform_5, window_bounds = array<i64: 4, 16>}]} {
    %c0 = arith.constant 0 : index
    %c0_0 = arith.constant 0 : index
    %0 = vector.load %arg2[%c0, %c0_0] : memref<32x64xf32, #tpu.memory_space<vmem>>, vector<32x64xf32>
    %1 = math.absf %0 : vector<32x64xf32>
    %cst = arith.constant 5.000000e-02 : f32
    %2 = vector.broadcast %cst : f32 to vector<32x64xf32>
    %3 = arith.cmpf ogt, %1, %2 : vector<32x64xf32>
    %cst_1 = arith.constant 0.000000e+00 : f32
    %4 = vector.broadcast %cst_1 : f32 to vector<32x64xf32>
    %5 = arith.select %3, %0, %4 : vector<32x64xi1>, vector<32x64xf32>
    %c0_2 = arith.constant 0 : index
    %c0_3 = arith.constant 0 : index
    %6 = vector.load %arg1[%c0_2, %c0_3] : memref<16x32xf32, #tpu.memory_space<vmem>>, vector<16x32xf32>
    %cst_4 = arith.constant dense<0.000000e+00> : vector<16x64xf32>
    %7 = tpu.matmul %6, %5, %cst_4 {dimension_numbers = #tpu.dot_dimension_numbers<[1], [0], [0], [1], [0, 0, 1, 1], [], []>} : vector<16x32xf32>, vector<32x64xf32>, vector<16x64xf32> -> vector<16x64xf32>
    %c0_5 = arith.constant 0 : index
    %c0_6 = arith.constant 0 : index
    %8 = vector.load %arg3[%c0_5, %c0_6] : memref<64x8xf32, #tpu.memory_space<vmem>>, vector<64x8xf32>
    %9 = math.absf %8 : vector<64x8xf32>
    %cst_7 = arith.constant 5.000000e-02 : f32
    %10 = vector.broadcast %cst_7 : f32 to vector<64x8xf32>
    %11 = arith.cmpf ogt, %9, %10 : vector<64x8xf32>
    %cst_8 = arith.constant 0.000000e+00 : f32
    %12 = vector.broadcast %cst_8 : f32 to vector<64x8xf32>
    %13 = arith.select %11, %8, %12 : vector<64x8xi1>, vector<64x8xf32>
    %cst_9 = arith.constant dense<0.000000e+00> : vector<16x8xf32>
    %14 = tpu.matmul %7, %13, %cst_9 {dimension_numbers = #tpu.dot_dimension_numbers<[1], [0], [0], [1], [0, 0, 1, 1], [], []>} : vector<16x64xf32>, vector<64x8xf32>, vector<16x8xf32> -> vector<16x8xf32>
    %cst_10 = arith.constant 1.000000e+00 : f32
    %15 = vector.broadcast %cst_10 : f32 to vector<16x1xf32>
    %16 = vector.extract_strided_slice %7 {offsets = [0, 0], sizes = [16, 16], strides = [1, 1]} : vector<16x64xf32> to vector<16x16xf32>
    %17 = vector.extract_strided_slice %7 {offsets = [0, 16], sizes = [16, 16], strides = [1, 1]} : vector<16x64xf32> to vector<16x16xf32>
    %18 = vector.extract_strided_slice %7 {offsets = [0, 32], sizes = [16, 16], strides = [1, 1]} : vector<16x64xf32> to vector<16x16xf32>
    %19 = vector.extract_strided_slice %7 {offsets = [0, 48], sizes = [16, 16], strides = [1, 1]} : vector<16x64xf32> to vector<16x16xf32>
    %20 = tpu.concatenate %16, %15, %17, %15, %18, %15, %19, %15 in 1 : vector<16x16xf32>, vector<16x1xf32>, vector<16x16xf32>, vector<16x1xf32>, vector<16x16xf32>, vector<16x1xf32>, vector<16x16xf32>, vector<16x1xf32> -> vector<16x68xf32>
    %c0_11 = arith.constant 0 : index
    %c0_12 = arith.constant 0 : index
    %21 = vector.load %arg4[%c0_11, %c0_12] : memref<16x68xf32, #tpu.memory_space<vmem>>, vector<16x68xf32>
    tpu.vector_store %arg4[%c0_11, %c0_12], %20 {strides = array<i32>} : memref<16x68xf32, #tpu.memory_space<vmem>>, vector<16x68xf32>,
    %22 = vector.extract_strided_slice %14 {offsets = [0, 4], sizes = [16, 4], strides = [1, 1]} : vector<16x8xf32> to vector<16x4xf32>
    %c0_13 = arith.constant 0 : index
    %c0_14 = arith.constant 0 : index
    %23 = vector.load %arg5[%c0_13, %c0_14] : memref<16x4xf32, #tpu.memory_space<vmem>>, vector<16x4xf32>
    tpu.vector_store %arg5[%c0_13, %c0_14], %22 {strides = array<i32>} : memref<16x4xf32, #tpu.memory_space<vmem>>, vector<16x4xf32>,
    %24 = vector.extract_strided_slice %14 {offsets = [0, 0], sizes = [16, 4], strides = [1, 1]} : vector<16x8xf32> to vector<16x4xf32>
    %25 = tpu.transpose %24, [1, 0] : vector<16x4xf32> -> vector<4x16xf32>
    %c0_15 = arith.constant 0 : index
    %c0_16 = arith.constant 0 : index
    %26 = vector.load %arg6[%c0_15, %c0_16] : memref<4x16xf32, #tpu.memory_space<vmem>>, vector<4x16xf32>
    tpu.vector_store %arg6[%c0_15, %c0_16], %25 {strides = array<i32>} : memref<4x16xf32, #tpu.memory_space<vmem>>, vector<4x16xf32>,
    return
  }
  func.func @transform_0(%arg0: i32) -> (i32, i32) {
    %c0_i32 = arith.constant 0 : i32
    %c0_i32_0 = arith.constant 0 : i32
    return %arg0, %c0_i32 : i32, i32
  }
  func.func @transform_1(%arg0: i32) -> (i32, i32) {
    %c0_i32 = arith.constant 0 : i32
    %c0_i32_0 = arith.constant 0 : i32
    %c0_i32_1 = arith.constant 0 : i32
    return %c0_i32, %c0_i32_0 : i32, i32
  }
  func.func @transform_2(%arg0: i32) -> (i32, i32) {
    %c0_i32 = arith.constant 0 : i32
    %c0_i32_0 = arith.constant 0 : i32
    %c0_i32_1 = arith.constant 0 : i32
    return %c0_i32, %c0_i32_0 : i32, i32
  }
  func.func @transform_3(%arg0: i32) -> (i32, i32) {
    %c0_i32 = arith.constant 0 : i32
    %c0_i32_0 = arith.constant 0 : i32
    return %arg0, %c0_i32 : i32, i32
  }
  func.func @transform_4(%arg0: i32) -> (i32, i32) {
    %c0_i32 = arith.constant 0 : i32
    %c0_i32_0 = arith.constant 0 : i32
    return %arg0, %c0_i32 : i32, i32
  }
  func.func @transform_5(%arg0: i32) -> (i32, i32) {
    %c0_i32 = arith.constant 0 : i32
    %c0_i32_0 = arith.constant 0 : i32
    return %c0_i32, %arg0 : i32, i32
  }
}

</mosaic_0001>

<llo_original>
// kernel: tpu_custom_call.1
$region0: #{tpu_custom_call.1}
  #allocation0 [shape = 'u32[]', space=smem, size = 0x4, offset = 0x4, fixed_abs, tag = 'smem constant byte address 0x4 - core index']
  #allocation1 [shape = 'u32[72,128]{1,0:T(1,128)}', space=vmem, size = 0x9000, scoped, tag = 'internal scratch']
  %s0 = inlined_call_operand.vmem [shape: f32[16,32], index: 0, kind: input, shape index: {}]
  %s1 = inlined_call_operand.vmem [shape: f32[32,64], index: 1, kind: input, shape index: {}]
  %s2 = inlined_call_operand.vmem [shape: f32[64,8], index: 2, kind: input, shape index: {}]
  %s3 = inlined_call_operand.hbm [shape: f32[16,68], index: 3, kind: output, shape index: {0}]
  %s4 = inlined_call_operand.vmem [shape: f32[16,4], index: 4, kind: output, shape index: {1}]
  %s5 = inlined_call_operand.hbm [shape: f32[4,16], index: 5, kind: output, shape index: {2}]
  %6 = xla_tuple %s3, %s4, %s5
  %s7 = sld [smem:[#allocation0]]
  $region38: #{tpu_custom_call.1} parent=0
    _
  %s9 = ssub.s32 1, %s7
  %s10 = scalar_select 0, %s9, %s7
  $region1: #{tpu_custom_call.1} parent=0
    #allocation2 [shape = 'u8[8192]{0}', space=vmem, size = 0x2000, scoped, tag = 'output window, operand 0, single buffered']
    #allocation3 [shape = 's32[1]{0}', space=sflag, size = 0x4, scoped, tag = 'scoped memory for tpu_custom_call.1']
    #allocation4 [shape = 'u8[2048]{0}', space=vmem, size = 0x800, scoped, tag = 'output window, operand 2, single buffered']
    #allocation5 [shape = 's32[1]{0}', space=sflag, size = 0x4, scoped, tag = 'scoped memory for tpu_custom_call.1']
    %11 = vsyncpa [#allocation3], 0
    %12 = vsyncpa [#allocation5], 0
    // Predicated region
    $region2: #{tpu_custom_call.1} parent=1 // pred_check
      _
    $region3: #{tpu_custom_call.1} parent=1 // pred_check_branch
      %14 = sbr.rel (0) target = $region5
    $region4: #{tpu_custom_call.1} parent=1 // pred_region
      _
    $region5: #{tpu_custom_call.1} parent=1 // pred_fallthru
      _
    // Predicated region
    $region6: #{tpu_custom_call.1} parent=1 // pred_check
      _
    $region7: #{tpu_custom_call.1} parent=1 // pred_check_branch
      %16 = sbr.rel (0) target = $region9
    $region8: #{tpu_custom_call.1} parent=1 // pred_region
      _
    $region9: #{tpu_custom_call.1} parent=1 // pred_fallthru
      _
    // Predicated region
    $region10: #{tpu_custom_call.1} parent=1 // pred_check
      _
    $region11: #{tpu_custom_call.1} parent=1 // pred_check_branch
      %18 = sbr.rel (0) target = $region13
    $region12: #{tpu_custom_call.1} parent=1 // pred_region
      _
    $region13: #{tpu_custom_call.1} parent=1 // pred_fallthru
      _
    %v19 = vld [vmem:[%s1] sm:$0xff]
    %v20 = vld [vmem:[%s1 + $0x8] sm:$0xff]
    %v21 = vld [vmem:[%s1 + $0x10] sm:$0xff]
    %v22 = vld [vmem:[%s1 + $0x18] sm:$0xff]
    %v23 = vand.u32 2147483647, %v19
    %v24 = vand.u32 2147483647, %v20
    %v25 = vand.u32 2147483647, %v21
    %v26 = vand.u32 2147483647, %v22
    %vm27 = vcmp.gt.f32.partialorder %v23, 0.05
    %vm28 = vcmp.gt.f32.partialorder %v24, 0.05
    %vm29 = vcmp.gt.f32.partialorder %v25, 0.05
    %vm30 = vcmp.gt.f32.partialorder %v26, 0.05
    %v31 = vsel %vm27, %v19, 0.0
    %v32 = vsel %vm28, %v20, 0.0
    %v33 = vsel %vm29, %v21, 0.0
    %v34 = vsel %vm30, %v22, 0.0
    %v35 = vld [vmem:[%s0] sm:$0xff]
    %v36 = vld [vmem:[%s0 + $0x8] sm:$0xff]
    %vm37 = vcmask 261120
    %v39 = vsel %vm37, %v35, 0
    %v42 = vsel %vm37, %v36, 0
    %44 = vmatpush.msra.mxu0 0.0
    %45 = vmatpush.msra.mxu0 0.0
    %46 = vmatpush.msra.mxu0 0.0
    %47 = vmatpush.msra.mxu0 0.0
    %48 = vmatpush.msra.mxu0 0.0
    %49 = vmatpush.msra.mxu0 0.0
    %50 = vmatpush.msra.mxu0 0.0
    %51 = vmatpush.msra.mxu0 0.0
    %52 = vmatpush.msra.mxu0 0.0
    %53 = vmatpush.msra.mxu0 0.0
    %54 = vmatpush.msra.mxu0 0.0
    %55 = vmatpush.msra.mxu0 0.0
    %56 = vmatpush.msra.mxu0 %v34
    %57 = vmatpush.msra.mxu0 %v33
    %58 = vmatpush.msra.mxu0 %v32
    %59 = vmatpush.msra.mxu0 %v31
    %60 = vmatmul.f32.gmra.mxu0 %v39
    %v61 = vpop.f32.mrf.mxu0
    %v62 = vadd.f32 0.0, %v61
    %63 = vmatmul.f32.gmra.mxu0 %v42
    %v64 = vpop.f32.mrf.mxu0
    %v65 = vadd.f32 0.0, %v64
    %66 = vdwg.mxu0
    %v67 = vld [vmem:[%s2] sm:$0xff]
    %v68 = vld [vmem:[%s2 + $0x8] sm:$0xff]
    %v69 = vld [vmem:[%s2 + $0x10] sm:$0xff]
    %v70 = vld [vmem:[%s2 + $0x18] sm:$0xff]
    %v71 = vld [vmem:[%s2 + $0x20] sm:$0xff]
    %v72 = vld [vmem:[%s2 + $0x28] sm:$0xff]
    %v73 = vld [vmem:[%s2 + $0x30] sm:$0xff]
    %v74 = vld [vmem:[%s2 + $0x38] sm:$0xff]
    %v75 = vand.u32 2147483647, %v67
    %v76 = vand.u32 2147483647, %v68
    %v77 = vand.u32 2147483647, %v69
    %v78 = vand.u32 2147483647, %v70
    %v79 = vand.u32 2147483647, %v71
    %v80 = vand.u32 2147483647, %v72
    %v81 = vand.u32 2147483647, %v73
    %v82 = vand.u32 2147483647, %v74
    %vm83 = vcmp.gt.f32.partialorder %v75, 0.05
    %vm84 = vcmp.gt.f32.partialorder %v76, 0.05
    %vm85 = vcmp.gt.f32.partialorder %v77, 0.05
    %vm86 = vcmp.gt.f32.partialorder %v78, 0.05
    %vm87 = vcmp.gt.f32.partialorder %v79, 0.05
    %vm88 = vcmp.gt.f32.partialorder %v80, 0.05
    %vm89 = vcmp.gt.f32.partialorder %v81, 0.05
    %vm90 = vcmp.gt.f32.partialorder %v82, 0.05
    %v91 = vsel %vm83, %v67, 0.0
    %v92 = vsel %vm84, %v68, 0.0
    %v93 = vsel %vm85, %v69, 0.0
    %v94 = vsel %vm86, %v70, 0.0
    %v95 = vsel %vm87, %v71, 0.0
    %v96 = vsel %vm88, %v72, 0.0
    %v97 = vsel %vm89, %v73, 0.0
    %v98 = vsel %vm90, %v74, 0.0
    %vm99 = vcmask 523264
    %v101 = vsel %vm99, %v62, 0
    %v104 = vsel %vm99, %v65, 0
    %106 = vmatpush.msra.mxu0 0.0
    %107 = vmatpush.msra.mxu0 0.0
    %108 = vmatpush.msra.mxu0 0.0
    %109 = vmatpush.msra.mxu0 0.0
    %110 = vmatpush.msra.mxu0 0.0
    %111 = vmatpush.msra.mxu0 0.0
    %112 = vmatpush.msra.mxu0 0.0
    %113 = vmatpush.msra.mxu0 0.0
    %114 = vmatpush.msra.mxu0 %v98
    %115 = vmatpush.msra.mxu0 %v97
    %116 = vmatpush.msra.mxu0 %v96
    %117 = vmatpush.msra.mxu0 %v95
    %118 = vmatpush.msra.mxu0 %v94
    %119 = vmatpush.msra.mxu0 %v93
    %120 = vmatpush.msra.mxu0 %v92
    %121 = vmatpush.msra.mxu0 %v91
    %122 = vmatmul.f32.gmra.mxu0 %v101
    %v123 = vpop.f32.mrf.mxu0
    %v124 = vadd.f32 0.0, %v123
    %125 = vmatmul.f32.gmra.mxu0 %v104
    %v126 = vpop.f32.mrf.mxu0
    %v127 = vadd.f32 0.0, %v126
    %128 = vdwg.mxu0
    %129 = vrot.lane.b32.xlu0 %v62, 1
    %v130 = vpop.permute.xlu0 %129
    %131 = vrot.lane.b32.xlu0 %v65, 1
    %v132 = vpop.permute.xlu0 %131
    %135 = vrot.lane.b32.xlu0 %v62, 2
    %v136 = vpop.permute.xlu0 %135
    %137 = vrot.lane.b32.xlu0 %v65, 2
    %v138 = vpop.permute.xlu0 %137
    %141 = vrot.lane.b32.xlu0 %v62, 3
    %v142 = vpop.permute.xlu0 %141
    %143 = vrot.lane.b32.xlu0 %v65, 3
    %v144 = vpop.permute.xlu0 %143
    %vm147 = vcmask 130048
    %v148 = vsel %vm147, %v62, 1.0
    %v149 = vsel %vm147, %v65, 1.0
    %vm150 = vcmask 138240
    %v151 = vsel %vm150, %v148, %v130
    %v152 = vsel %vm150, %v149, %v132
    %vm153 = vcmask 269312
    %v154 = vsel %vm153, %v151, 1.0
    %v155 = vsel %vm153, %v152, 1.0
    %vm156 = vcmask 277504
    %v157 = vsel %vm156, %v154, %v136
    %v158 = vsel %vm156, %v155, %v138
    %vm159 = vcmask 408576
    %v160 = vsel %vm159, %v157, 1.0
    %v161 = vsel %vm159, %v158, 1.0
    %vm162 = vcmask 416768
    %v163 = vsel %vm162, %v160, %v142
    %v164 = vsel %vm162, %v161, %v144
    %vm165 = vcmask 547840
    %v166 = vsel %vm165, %v163, 1.0
    %v167 = vsel %vm165, %v164, 1.0
    %vm168 = vcmask 556032
    %169 = vst.msk [vmem:[#allocation2] sm:$0xff] %vm168, %v166
    %170 = vst.msk [vmem:[#allocation2 + $0x8] sm:$0xff] %vm168, %v167
    %173 = vrot.lane.b32.xlu0 %v124, 124
    %v174 = vpop.permute.xlu0 %173
    %175 = vrot.lane.b32.xlu0 %v127, 124
    %v176 = vpop.permute.xlu0 %175
    %vm179 = vcmask 31744
    %180 = vst.msk [vmem:[%s4] sm:$0xff] %vm179, %v174
    %181 = vst.msk [vmem:[%s4 + $0x8] sm:$0xff] %vm179, %v176
    %182 = vxpose.xlu0.b32.start [1/16] %v124, 128
    %183 = vxpose.xlu0.b32.cont [2/16] %v127, 128
    %184 = vxpose.xlu0.b32.cont [3/16] 0.0, 128
    %185 = vxpose.xlu0.b32.cont [4/16] 0.0, 128
    %186 = vxpose.xlu0.b32.cont [5/16] 0.0, 128
    %187 = vxpose.xlu0.b32.cont [6/16] 0.0, 128
    %188 = vxpose.xlu0.b32.cont [7/16] 0.0, 128
    %189 = vxpose.xlu0.b32.cont [8/16] 0.0, 128
    %190 = vxpose.xlu0.b32.cont [9/16] 0.0, 128
    %191 = vxpose.xlu0.b32.cont [10/16] 0.0, 128
    %192 = vxpose.xlu0.b32.cont [11/16] 0.0, 128
    %193 = vxpose.xlu0.b32.cont [12/16] 0.0, 128
    %194 = vxpose.xlu0.b32.cont [13/16] 0.0, 128
    %195 = vxpose.xlu0.b32.cont [14/16] 0.0, 128
    %196 = vxpose.xlu0.b32.cont [15/16] 0.0, 128
    %197 = vxpose.xlu0.b32.end [16/16] 0.0, 128
    %v198 = vpop.trf.xlu0
    %v199 = vpop.trf.xlu0
    %v200 = vpop.trf.xlu0
    %v201 = vpop.trf.xlu0
    %v202 = vpop.trf.xlu0
    %v203 = vpop.trf.xlu0
    %v204 = vpop.trf.xlu0
    %v205 = vpop.trf.xlu0
    %v206 = vpop.trf.xlu0
    %v207 = vpop.trf.xlu0
    %v208 = vpop.trf.xlu0
    %v209 = vpop.trf.xlu0
    %v210 = vpop.trf.xlu0
    %v211 = vpop.trf.xlu0
    %v212 = vpop.trf.xlu0
    %v213 = vpop.trf.xlu0
    %vm214 = vcmask 125952
    %215 = vst.msk [vmem:[#allocation4] sm:$0xf] %vm214, %v198
    // Predicated region
    $region14: #{tpu_custom_call.1} parent=1 // pred_check
      _
    $region15: #{tpu_custom_call.1} parent=1 // pred_check_branch
      %217 = sbr.rel (0) target = $region17
    $region16: #{tpu_custom_call.1} parent=1 // pred_region
      %219 = vsyncadd [#allocation3], 0
      %s220 = sshll.u32 [#allocation2], 4
      %s221 = int_to_ptr.vmem [resolvable:$true] %s220
      %s222 = sshll.u32 %s3, 4
      %s223 = int_to_ptr.hbm [resolvable:$true] %s222
      %228 = dma.vmem_to_hbm [thread:$0]  %s221, 256, %s223, [#allocation3], 128, 128, 8
    $region17: #{tpu_custom_call.1} parent=1 // pred_fallthru
      _
    // Predicated region
    $region18: #{tpu_custom_call.1} parent=1 // pred_check
      _
    $region19: #{tpu_custom_call.1} parent=1 // pred_check_branch
      %230 = sbr.rel (0) target = $region21
    $region20: #{tpu_custom_call.1} parent=1 // pred_region
      _
    $region21: #{tpu_custom_call.1} parent=1 // pred_fallthru
      _
    // Predicated region
    $region22: #{tpu_custom_call.1} parent=1 // pred_check
      _
    $region23: #{tpu_custom_call.1} parent=1 // pred_check_branch
      %232 = sbr.rel (0) target = $region25
    $region24: #{tpu_custom_call.1} parent=1 // pred_region
      %234 = vsyncadd [#allocation5], 0
      %s236 = sshll.u32 [#allocation4], 4
      %s237 = int_to_ptr.vmem [resolvable:$true] %s236
      %s238 = sshll.u32 %s5, 4
      %s239 = int_to_ptr.hbm [resolvable:$true] %s238
      %241 = dma.vmem_to_hbm [thread:$0]  %s237, 64, %s239, [#allocation5]
    $region25: #{tpu_custom_call.1} parent=1 // pred_fallthru
      _
    // Predicated region
    $region26: #{tpu_custom_call.1} parent=1 // pred_check
      _
    $region27: #{tpu_custom_call.1} parent=1 // pred_check_branch
      %243 = sbr.rel (0) target = $region29
    $region28: #{tpu_custom_call.1} parent=1 // pred_region
      %245 = dma.done [#allocation3], 256
    $region29: #{tpu_custom_call.1} parent=1 // pred_fallthru
      _
    // Predicated region
    $region30: #{tpu_custom_call.1} parent=1 // pred_check
      _
    $region31: #{tpu_custom_call.1} parent=1 // pred_check_branch
      %247 = sbr.rel (0) target = $region33
    $region32: #{tpu_custom_call.1} parent=1 // pred_region
      _
    $region33: #{tpu_custom_call.1} parent=1 // pred_fallthru
      _
    // Predicated region
    $region34: #{tpu_custom_call.1} parent=1 // pred_check
      _
    $region35: #{tpu_custom_call.1} parent=1 // pred_check_branch
      %249 = sbr.rel (0) target = $region37
    $region36: #{tpu_custom_call.1} parent=1 // pred_region
      %251 = dma.done [#allocation5], 64
    $region37: #{tpu_custom_call.1} parent=1 // pred_fallthru
      _
    %252 = vsyncpa [#allocation3], 1
    %253 = vsyncpa [#allocation5], 1

</llo_original>
